<compile_context>
chip_gen: v5e
topology: v5e:2x2
jax: 0.10.0
libtpu: 0.0.40
codegen_flags: <defaults>
</compile_context>

<pallas_src>
import math

import jax
import jax.numpy as jnp
from jax import lax
from jax.experimental import pallas as pl
from jax.experimental.pallas import tpu as pltpu

BN_EPS = 1e-5


# --------------------------------------------------------------------------
# Fused Pallas kernel
# --------------------------------------------------------------------------
def _linear_bn(x, wt, gb):
    """BatchNorm1d(training)( x @ Wt ).

    Linear bias is intentionally omitted: BN's batch-mean subtraction cancels
    it exactly, so BN(xW^T + b) == BN(xW^T)."""
    y = jnp.dot(x, wt, preferred_element_type=jnp.float32)          # (N, D)
    mean = jnp.mean(y, axis=0, keepdims=True)
    var = jnp.mean((y - mean) ** 2, axis=0, keepdims=True)          # biased var
    return (y - mean) * lax.rsqrt(var + BN_EPS) * gb[0:1, :] + gb[1:2, :]


def jamie_fused_kernel(x0_ref, x1_ref, corr_ref,
                       e0w_ref, e0gb_ref, e1w_ref, e1gb_ref,
                       d0w_ref, d0gb_ref, d1w_ref, d1gb_ref,
                       emb0_ref, emb1_ref, rec0_ref, rec1_ref):
    # ---- encoders (Linear + BN) -----------------------------------------
    emb0 = _linear_bn(x0_ref[...], e0w_ref[...], e0gb_ref[...])     # (n0, D)
    emb1 = _linear_bn(x1_ref[...], e1w_ref[...], e1gb_ref[...])     # (n1, D)
    emb0_ref[...] = emb0.astype(emb0_ref.dtype)
    emb1_ref[...] = emb1.astype(emb1_ref.dtype)

    # ---- combine (both modalities; corr loaded once, no materialized corr.T)
    corr = corr_ref[...]                                            # (n0, n1)
    n0 = corr.shape[0]
    ones_col = jnp.ones((n0, 1), jnp.float32)
    # contract dim 0 of both operands  ==  corr^T @ rhs  (MXU, no transpose op)
    t_dims = (((0,), (0,)), ((), ()))

    mixed0 = jnp.dot(corr, emb1, preferred_element_type=jnp.float32)        # (n0, D)
    mixed1 = lax.dot_general(corr, emb0, t_dims,
                             preferred_element_type=jnp.float32)            # (n1, D)
    denom0 = 1.0 + jnp.sum(corr, axis=1, keepdims=True)                     # (n0, 1)
    denom1 = 1.0 + lax.dot_general(corr, ones_col, t_dims,
                                   preferred_element_type=jnp.float32)      # (n1, 1)

    comb0 = (emb0 + mixed0) * pl.reciprocal(denom0, approx=False)
    comb1 = (emb1 + mixed1) * pl.reciprocal(denom1, approx=False)

    # ---- decoders (Linear + BN) -----------------------------------------
    rec0_ref[...] = _linear_bn(comb0, d0w_ref[...], d0gb_ref[...]).astype(rec0_ref.dtype)
    rec1_ref[...] = _linear_bn(comb1, d1w_ref[...], d1gb_ref[...]).astype(rec1_ref.dtype)


# --------------------------------------------------------------------------
# pallas_call wrapper (everything fits in VMEM at these sizes -> grid=(1,))
# --------------------------------------------------------------------------
def _full_spec(shape):
    return pl.BlockSpec(shape, lambda i: (0,) * len(shape))


@jax.jit
def jamie_forward(prep, x0, x1, corr):
    n0, din0 = x0.shape
    n1, din1 = x1.shape
    dout = prep["e0w"].shape[1]

    inputs = (x0, x1, corr,
              prep["e0w"], prep["e0gb"], prep["e1w"], prep["e1gb"],
              prep["d0w"], prep["d0gb"], prep["d1w"], prep["d1gb"])

    out_shapes = (
        jax.ShapeDtypeStruct((n0, dout), jnp.float32),   # embedded[0]
        jax.ShapeDtypeStruct((n1, dout), jnp.float32),   # embedded[1]
        jax.ShapeDtypeStruct((n0, din0), jnp.float32),   # reconstructed[0]
        jax.ShapeDtypeStruct((n1, din1), jnp.float32),   # reconstructed[1]
    )

    flops = 2 * (n0 * din0 * dout + n1 * din1 * dout       # encoders
                 + 2 * n0 * n1 * dout + 2 * n0 * n1        # combine matmuls + sums
                 + n0 * dout * din0 + n1 * dout * din1)    # decoders
    bytes_accessed = (sum(a.size * a.dtype.itemsize for a in inputs)
                      + sum(math.prod(s.shape) * s.dtype.itemsize for s in out_shapes))
    transcendentals = 2 * dout + din0 + din1 + n0 + n1     # rsqrt rows + reciprocals

    emb0, emb1, rec0, rec1 = pl.pallas_call(
        jamie_fused_kernel,
        out_shape=out_shapes,
        grid=(1,),
        in_specs=[_full_spec(a.shape) for a in inputs],
        out_specs=tuple(_full_spec(s.shape) for s in out_shapes),
        compiler_params=pltpu.CompilerParams(dimension_semantics=("arbitrary",)),
        cost_estimate=pl.CostEstimate(flops=int(flops),
                                      transcendentals=int(transcendentals),
                                      bytes_accessed=int(bytes_accessed)),
    )(*inputs)
    return [emb0, emb1], [rec0, rec1]


# --------------------------------------------------------------------------
# Parameter init (deterministic, PyTorch-default-style) + one-time packing
# --------------------------------------------------------------------------
def init_linear(key, din, dout):
    kw, kb = jax.random.split(key)
    bound = 1.0 / math.sqrt(din)
    w = jax.random.uniform(kw, (dout, din), jnp.float32, -bound, bound)
    b = jax.random.uniform(kb, (dout,), jnp.float32, -bound, bound)
    return w, b


def init_params(key, input_dim, output_dim):
    params = {"enc": [], "dec": []}
    keys = jax.random.split(key, 2 * len(input_dim))
    for i, din in enumerate(input_dim):
        w, b = init_linear(keys[2 * i], din, output_dim)
        params["enc"].append(dict(w=w, b=b,
                                  gamma=jnp.ones((output_dim,), jnp.float32),
                                  beta=jnp.zeros((output_dim,), jnp.float32)))
        w2, b2 = init_linear(keys[2 * i + 1], output_dim, din)
        params["dec"].append(dict(w=w2, b=b2,
                                  gamma=jnp.ones((din,), jnp.float32),
                                  beta=jnp.zeros((din,), jnp.float32)))
    return params


def prepare_params(params):
    """One-time packing for the fused kernel:
       - weights pre-transposed to (Din, Dout): no per-call XLA transpose,
       - gamma/beta stacked into a single (2, D) tile per layer,
       - linear bias dropped (exactly cancelled by training-mode BN)."""
    def pack(p):
        return jnp.asarray(p["w"].T), jnp.stack([p["gamma"], p["beta"]], axis=0)

    e0w, e0gb = pack(params["enc"][0])
    e1w, e1gb = pack(params["enc"][1])
    d0w, d0gb = pack(params["dec"][0])
    d1w, d1gb = pack(params["dec"][1])
    return dict(e0w=e0w, e0gb=e0gb, e1w=e1w, e1gb=e1gb,
                d0w=d0w, d0gb=d0gb, d1w=d1w, d1gb=d1gb)


# --------------------------------------------------------------------------
# Pure-JAX reference (faithful to the PyTorch module, bias included)
# --------------------------------------------------------------------------
def _linear_bn_ref(x, w, b, gamma, beta):
    y = x @ w.T + b
    mean = jnp.mean(y, axis=0, keepdims=True)
    var = jnp.mean((y - mean) ** 2, axis=0, keepdims=True)
    return (y - mean) / jnp.sqrt(var + BN_EPS) * gamma + beta


def jamie_forward_ref(params, X, corr):
    embedded = [_linear_bn_ref(X[i], **params["enc"][i]) for i in range(2)]
    combined = [
        (embedded[0] + corr @ embedded[1]) / (1.0 + corr.sum(1).reshape(-1, 1)),
        (embedded[1] + corr.T @ embedded[0]) / (1.0 + corr.sum(0).reshape(-1, 1)),
    ]
    reconstructed = [_linear_bn_ref(combined[i], **params["dec"][i]) for i in range(2)]
    return embedded, reconstructed


# --------------------------------------------------------------------------
if __name__ == "__main__":
    key = jax.random.PRNGKey(0)
    k_p, k_x0, k_x1, k_c = jax.random.split(key, 4)

    input_dim = (16, 32)        # two modalities
    output_dim = 8              # latent dim
    n0, n1 = 8, 16              # samples per modality

    params = init_params(k_p, input_dim, output_dim)
    prep = prepare_params(params)

    x0 = jax.random.normal(k_x0, (n0, input_dim[0]), jnp.float32)
    x1 = jax.random.normal(k_x1, (n1, input_dim[1]), jnp.float32)
    corr = jax.random.uniform(k_c, (n0, n1), jnp.float32)

    embedded, reconstructed = jamie_forward(prep, x0, x1, corr)
    jax.block_until_ready((embedded, reconstructed))

    emb_ref, rec_ref = jamie_forward_ref(params, (x0, x1), corr)
    for a, b in zip(embedded + reconstructed, emb_ref + rec_ref):
        assert a.shape == b.shape
        assert jnp.allclose(a, b, rtol=1e-4, atol=1e-4), "mismatch vs reference"

    print("KERNEL_OK")
</pallas_src>

<mosaic_0001>
module attributes {stable_mosaic.version = 11 : i64} {
  func.func @jamie_fused_kernel(%arg0: i32, %arg1: memref<8x16xf32, #tpu.memory_space<vmem>>, %arg2: memref<16x32xf32, #tpu.memory_space<vmem>>, %arg3: memref<8x16xf32, #tpu.memory_space<vmem>>, %arg4: memref<16x8xf32, #tpu.memory_space<vmem>>, %arg5: memref<2x8xf32, #tpu.memory_space<vmem>>, %arg6: memref<32x8xf32, #tpu.memory_space<vmem>>, %arg7: memref<2x8xf32, #tpu.memory_space<vmem>>, %arg8: memref<8x16xf32, #tpu.memory_space<vmem>>, %arg9: memref<2x16xf32, #tpu.memory_space<vmem>>, %arg10: memref<8x32xf32, #tpu.memory_space<vmem>>, %arg11: memref<2x32xf32, #tpu.memory_space<vmem>>, %arg12: memref<8x8xf32, #tpu.memory_space<vmem>>, %arg13: memref<16x8xf32, #tpu.memory_space<vmem>>, %arg14: memref<8x16xf32, #tpu.memory_space<vmem>>, %arg15: memref<16x32xf32, #tpu.memory_space<vmem>>) attributes {dimension_semantics = [#tpu.dimension_semantics<arbitrary>], iteration_bounds = array<i64: 1>, scalar_prefetch = 0 : i64, scratch_operands = 0 : i64, tpu.core_type = #tpu.core_type<tc>, window_params = [{pipeline_mode = #tpu.pipeline_mode<synchronous>, transform_indices = @transform_0, window_bounds = array<i64: 8, 16>}, {pipeline_mode = #tpu.pipeline_mode<synchronous>, transform_indices = @transform_1, window_bounds = array<i64: 16, 32>}, {pipeline_mode = #tpu.pipeline_mode<synchronous>, transform_indices = @transform_2, window_bounds = array<i64: 8, 16>}, {pipeline_mode = #tpu.pipeline_mode<synchronous>, transform_indices = @transform_3, window_bounds = array<i64: 16, 8>}, {pipeline_mode = #tpu.pipeline_mode<synchronous>, transform_indices = @transform_4, window_bounds = array<i64: 2, 8>}, {pipeline_mode = #tpu.pipeline_mode<synchronous>, transform_indices = @transform_5, window_bounds = array<i64: 32, 8>}, {pipeline_mode = #tpu.pipeline_mode<synchronous>, transform_indices = @transform_6, window_bounds = array<i64: 2, 8>}, {pipeline_mode = #tpu.pipeline_mode<synchronous>, transform_indices = @transform_7, window_bounds = array<i64: 8, 16>}, {pipeline_mode = #tpu.pipeline_mode<synchronous>, transform_indices = @transform_8, window_bounds = array<i64: 2, 16>}, {pipeline_mode = #tpu.pipeline_mode<synchronous>, transform_indices = @transform_9, window_bounds = array<i64: 8, 32>}, {pipeline_mode = #tpu.pipeline_mode<synchronous>, transform_indices = @transform_10, window_bounds = array<i64: 2, 32>}, {pipeline_mode = #tpu.pipeline_mode<synchronous>, transform_indices = @transform_11, window_bounds = array<i64: 8, 8>}, {pipeline_mode = #tpu.pipeline_mode<synchronous>, transform_indices = @transform_12, window_bounds = array<i64: 16, 8>}, {pipeline_mode = #tpu.pipeline_mode<synchronous>, transform_indices = @transform_13, window_bounds = array<i64: 8, 16>}, {pipeline_mode = #tpu.pipeline_mode<synchronous>, transform_indices = @transform_14, window_bounds = array<i64: 16, 32>}]} {
    %c0 = arith.constant 0 : index
    %c0_0 = arith.constant 0 : index
    %0 = vector.load %arg1[%c0, %c0_0] : memref<8x16xf32, #tpu.memory_space<vmem>>, vector<8x16xf32>
    %c0_1 = arith.constant 0 : index
    %c0_2 = arith.constant 0 : index
    %1 = vector.load %arg4[%c0_1, %c0_2] : memref<16x8xf32, #tpu.memory_space<vmem>>, vector<16x8xf32>
    %c0_3 = arith.constant 0 : index
    %c0_4 = arith.constant 0 : index
    %2 = vector.load %arg5[%c0_3, %c0_4] : memref<2x8xf32, #tpu.memory_space<vmem>>, vector<2x8xf32>
    %cst = arith.constant dense<0.000000e+00> : vector<8x8xf32>
    %3 = tpu.matmul %0, %1, %cst {dimension_numbers = #tpu.dot_dimension_numbers<[1], [0], [0], [1], [0, 0, 1, 1], [], []>} : vector<8x16xf32>, vector<16x8xf32>, vector<8x8xf32> -> vector<8x8xf32>
    %cst_5 = arith.constant dense<0.000000e+00> : vector<8xf32>
    %4 = vector.multi_reduction <add>, %3, %cst_5 [0] : vector<8x8xf32> to vector<8xf32>
    %5 = vector.shape_cast %4 : vector<8xf32> to vector<1x8xf32>
    %cst_6 = arith.constant 8.000000e+00 : f32
    %6 = vector.broadcast %cst_6 : f32 to vector<1x8xf32>
    %7 = arith.divf %5, %6 : vector<1x8xf32>
    %8 = vector.broadcast %7 : vector<1x8xf32> to vector<8x8xf32>
    %9 = arith.subf %3, %8 : vector<8x8xf32>
    %10 = arith.mulf %9, %9 : vector<8x8xf32>
    %cst_7 = arith.constant dense<0.000000e+00> : vector<8xf32>
    %11 = vector.multi_reduction <add>, %10, %cst_7 [0] : vector<8x8xf32> to vector<8xf32>
    %12 = vector.shape_cast %11 : vector<8xf32> to vector<1x8xf32>
    %cst_8 = arith.constant 8.000000e+00 : f32
    %13 = vector.broadcast %cst_8 : f32 to vector<1x8xf32>
    %14 = arith.divf %12, %13 : vector<1x8xf32>
    %15 = vector.broadcast %7 : vector<1x8xf32> to vector<8x8xf32>
    %16 = arith.subf %3, %15 : vector<8x8xf32>
    %cst_9 = arith.constant 9.99999974E-6 : f32
    %17 = vector.broadcast %cst_9 : f32 to vector<1x8xf32>
    %18 = arith.addf %14, %17 : vector<1x8xf32>
    %19 = math.rsqrt %18 : vector<1x8xf32>
    %20 = vector.broadcast %19 : vector<1x8xf32> to vector<8x8xf32>
    %21 = arith.mulf %16, %20 : vector<8x8xf32>
    %22 = vector.extract_strided_slice %2 {offsets = [0, 0], sizes = [1, 8], strides = [1, 1]} : vector<2x8xf32> to vector<1x8xf32>
    %23 = vector.broadcast %22 : vector<1x8xf32> to vector<8x8xf32>
    %24 = arith.mulf %21, %23 : vector<8x8xf32>
    %25 = vector.extract_strided_slice %2 {offsets = [1, 0], sizes = [1, 8], strides = [1, 1]} : vector<2x8xf32> to vector<1x8xf32>
    %26 = vector.broadcast %25 : vector<1x8xf32> to vector<8x8xf32>
    %27 = arith.addf %24, %26 : vector<8x8xf32>
    %c0_10 = arith.constant 0 : index
    %c0_11 = arith.constant 0 : index
    %28 = vector.load %arg2[%c0_10, %c0_11] : memref<16x32xf32, #tpu.memory_space<vmem>>, vector<16x32xf32>
    %c0_12 = arith.constant 0 : index
    %c0_13 = arith.constant 0 : index
    %29 = vector.load %arg6[%c0_12, %c0_13] : memref<32x8xf32, #tpu.memory_space<vmem>>, vector<32x8xf32>
    %c0_14 = arith.constant 0 : index
    %c0_15 = arith.constant 0 : index
    %30 = vector.load %arg7[%c0_14, %c0_15] : memref<2x8xf32, #tpu.memory_space<vmem>>, vector<2x8xf32>
    %cst_16 = arith.constant dense<0.000000e+00> : vector<16x8xf32>
    %31 = tpu.matmul %28, %29, %cst_16 {dimension_numbers = #tpu.dot_dimension_numbers<[1], [0], [0], [1], [0, 0, 1, 1], [], []>} : vector<16x32xf32>, vector<32x8xf32>, vector<16x8xf32> -> vector<16x8xf32>
    %cst_17 = arith.constant dense<0.000000e+00> : vector<8xf32>
    %32 = vector.multi_reduction <add>, %31, %cst_17 [0] : vector<16x8xf32> to vector<8xf32>
    %33 = vector.shape_cast %32 : vector<8xf32> to vector<1x8xf32>
    %cst_18 = arith.constant 1.600000e+01 : f32
    %34 = vector.broadcast %cst_18 : f32 to vector<1x8xf32>
    %35 = arith.divf %33, %34 : vector<1x8xf32>
    %36 = vector.broadcast %35 : vector<1x8xf32> to vector<16x8xf32>
    %37 = arith.subf %31, %36 : vector<16x8xf32>
    %38 = arith.mulf %37, %37 : vector<16x8xf32>
    %cst_19 = arith.constant dense<0.000000e+00> : vector<8xf32>
    %39 = vector.multi_reduction <add>, %38, %cst_19 [0] : vector<16x8xf32> to vector<8xf32>
    %40 = vector.shape_cast %39 : vector<8xf32> to vector<1x8xf32>
    %cst_20 = arith.constant 1.600000e+01 : f32
    %41 = vector.broadcast %cst_20 : f32 to vector<1x8xf32>
    %42 = arith.divf %40, %41 : vector<1x8xf32>
    %43 = vector.broadcast %35 : vector<1x8xf32> to vector<16x8xf32>
    %44 = arith.subf %31, %43 : vector<16x8xf32>
    %cst_21 = arith.constant 9.99999974E-6 : f32
    %45 = vector.broadcast %cst_21 : f32 to vector<1x8xf32>
    %46 = arith.addf %42, %45 : vector<1x8xf32>
    %47 = math.rsqrt %46 : vector<1x8xf32>
    %48 = vector.broadcast %47 : vector<1x8xf32> to vector<16x8xf32>
    %49 = arith.mulf %44, %48 : vector<16x8xf32>
    %50 = vector.extract_strided_slice %30 {offsets = [0, 0], sizes = [1, 8], strides = [1, 1]} : vector<2x8xf32> to vector<1x8xf32>
    %51 = vector.broadcast %50 : vector<1x8xf32> to vector<16x8xf32>
    %52 = arith.mulf %49, %51 : vector<16x8xf32>
    %53 = vector.extract_strided_slice %30 {offsets = [1, 0], sizes = [1, 8], strides = [1, 1]} : vector<2x8xf32> to vector<1x8xf32>
    %54 = vector.broadcast %53 : vector<1x8xf32> to vector<16x8xf32>
    %55 = arith.addf %52, %54 : vector<16x8xf32>
    %c0_22 = arith.constant 0 : index
    %c0_23 = arith.constant 0 : index
    %56 = vector.load %arg12[%c0_22, %c0_23] : memref<8x8xf32, #tpu.memory_space<vmem>>, vector<8x8xf32>
    tpu.vector_store %arg12[%c0_22, %c0_23], %27 {strides = array<i32>} : memref<8x8xf32, #tpu.memory_space<vmem>>, vector<8x8xf32>,
    %c0_24 = arith.constant 0 : index
    %c0_25 = arith.constant 0 : index
    %57 = vector.load %arg13[%c0_24, %c0_25] : memref<16x8xf32, #tpu.memory_space<vmem>>, vector<16x8xf32>
    tpu.vector_store %arg13[%c0_24, %c0_25], %55 {strides = array<i32>} : memref<16x8xf32, #tpu.memory_space<vmem>>, vector<16x8xf32>,
    %c0_26 = arith.constant 0 : index
    %c0_27 = arith.constant 0 : index
    %58 = vector.load %arg3[%c0_26, %c0_27] : memref<8x16xf32, #tpu.memory_space<vmem>>, vector<8x16xf32>
    %cst_28 = arith.constant 1.000000e+00 : f32
    %59 = vector.broadcast %cst_28 : f32 to vector<8x1xf32>
    %cst_29 = arith.constant dense<0.000000e+00> : vector<8x8xf32>
    %60 = tpu.matmul %58, %55, %cst_29 {dimension_numbers = #tpu.dot_dimension_numbers<[1], [0], [0], [1], [0, 0, 1, 1], [], []>} : vector<8x16xf32>, vector<16x8xf32>, vector<8x8xf32> -> vector<8x8xf32>
    %cst_30 = arith.constant dense<0.000000e+00> : vector<16x8xf32>
    %61 = tpu.matmul %58, %27, %cst_30 {dimension_numbers = #tpu.dot_dimension_numbers<[0], [0], [1], [1], [0, 1, 1, 1], [], []>} : vector<8x16xf32>, vector<8x8xf32>, vector<16x8xf32> -> vector<16x8xf32>
    %cst_31 = arith.constant dense<0.000000e+00> : vector<8xf32>
    %62 = vector.multi_reduction <add>, %58, %cst_31 [1] : vector<8x16xf32> to vector<8xf32>
    %63 = vector.shape_cast %62 : vector<8xf32> to vector<8x1xf32>
    %cst_32 = arith.constant 1.000000e+00 : f32
    %64 = vector.broadcast %cst_32 : f32 to vector<8x1xf32>
    %65 = arith.addf %64, %63 : vector<8x1xf32>
    %cst_33 = arith.constant dense<0.000000e+00> : vector<16x1xf32>
    %66 = tpu.matmul %58, %59, %cst_33 {dimension_numbers = #tpu.dot_dimension_numbers<[0], [0], [1], [1], [0, 1, 1, 1], [], []>} : vector<8x16xf32>, vector<8x1xf32>, vector<16x1xf32> -> vector<16x1xf32>
    %cst_34 = arith.constant 1.000000e+00 : f32
    %67 = vector.broadcast %cst_34 : f32 to vector<16x1xf32>
    %68 = arith.addf %67, %66 : vector<16x1xf32>
    %69 = arith.addf %27, %60 : vector<8x8xf32>
    %70 = tpu.reciprocal %65 : vector<8x1xf32> -> vector<8x1xf32>
    %71 = vector.broadcast %70 : vector<8x1xf32> to vector<8x8xf32>
    %72 = arith.mulf %69, %71 : vector<8x8xf32>
    %73 = arith.addf %55, %61 : vector<16x8xf32>
    %74 = tpu.reciprocal %68 : vector<16x1xf32> -> vector<16x1xf32>
    %75 = vector.broadcast %74 : vector<16x1xf32> to vector<16x8xf32>
    %76 = arith.mulf %73, %75 : vector<16x8xf32>
    %c0_35 = arith.constant 0 : index
    %c0_36 = arith.constant 0 : index
    %77 = vector.load %arg8[%c0_35, %c0_36] : memref<8x16xf32, #tpu.memory_space<vmem>>, vector<8x16xf32>
    %c0_37 = arith.constant 0 : index
    %c0_38 = arith.constant 0 : index
    %78 = vector.load %arg9[%c0_37, %c0_38] : memref<2x16xf32, #tpu.memory_space<vmem>>, vector<2x16xf32>
    %cst_39 = arith.constant dense<0.000000e+00> : vector<8x16xf32>
    %79 = tpu.matmul %72, %77, %cst_39 {dimension_numbers = #tpu.dot_dimension_numbers<[1], [0], [0], [1], [0, 0, 1, 1], [], []>} : vector<8x8xf32>, vector<8x16xf32>, vector<8x16xf32> -> vector<8x16xf32>
    %cst_40 = arith.constant dense<0.000000e+00> : vector<16xf32>
    %80 = vector.multi_reduction <add>, %79, %cst_40 [0] : vector<8x16xf32> to vector<16xf32>
    %81 = vector.shape_cast %80 : vector<16xf32> to vector<1x16xf32>
    %cst_41 = arith.constant 8.000000e+00 : f32
    %82 = vector.broadcast %cst_41 : f32 to vector<1x16xf32>
    %83 = arith.divf %81, %82 : vector<1x16xf32>
    %84 = vector.broadcast %83 : vector<1x16xf32> to vector<8x16xf32>
    %85 = arith.subf %79, %84 : vector<8x16xf32>
    %86 = arith.mulf %85, %85 : vector<8x16xf32>
    %cst_42 = arith.constant dense<0.000000e+00> : vector<16xf32>
    %87 = vector.multi_reduction <add>, %86, %cst_42 [0] : vector<8x16xf32> to vector<16xf32>
    %88 = vector.shape_cast %87 : vector<16xf32> to vector<1x16xf32>
    %cst_43 = arith.constant 8.000000e+00 : f32
    %89 = vector.broadcast %cst_43 : f32 to vector<1x16xf32>
    %90 = arith.divf %88, %89 : vector<1x16xf32>
    %91 = vector.broadcast %83 : vector<1x16xf32> to vector<8x16xf32>
    %92 = arith.subf %79, %91 : vector<8x16xf32>
    %cst_44 = arith.constant 9.99999974E-6 : f32
    %93 = vector.broadcast %cst_44 : f32 to vector<1x16xf32>
    %94 = arith.addf %90, %93 : vector<1x16xf32>
    %95 = math.rsqrt %94 : vector<1x16xf32>
    %96 = vector.broadcast %95 : vector<1x16xf32> to vector<8x16xf32>
    %97 = arith.mulf %92, %96 : vector<8x16xf32>
    %98 = vector.extract_strided_slice %78 {offsets = [0, 0], sizes = [1, 16], strides = [1, 1]} : vector<2x16xf32> to vector<1x16xf32>
    %99 = vector.broadcast %98 : vector<1x16xf32> to vector<8x16xf32>
    %100 = arith.mulf %97, %99 : vector<8x16xf32>
    %101 = vector.extract_strided_slice %78 {offsets = [1, 0], sizes = [1, 16], strides = [1, 1]} : vector<2x16xf32> to vector<1x16xf32>
    %102 = vector.broadcast %101 : vector<1x16xf32> to vector<8x16xf32>
    %103 = arith.addf %100, %102 : vector<8x16xf32>
    %c0_45 = arith.constant 0 : index
    %c0_46 = arith.constant 0 : index
    %104 = vector.load %arg14[%c0_45, %c0_46] : memref<8x16xf32, #tpu.memory_space<vmem>>, vector<8x16xf32>
    tpu.vector_store %arg14[%c0_45, %c0_46], %103 {strides = array<i32>} : memref<8x16xf32, #tpu.memory_space<vmem>>, vector<8x16xf32>,
    %c0_47 = arith.constant 0 : index
    %c0_48 = arith.constant 0 : index
    %105 = vector.load %arg10[%c0_47, %c0_48] : memref<8x32xf32, #tpu.memory_space<vmem>>, vector<8x32xf32>
    %c0_49 = arith.constant 0 : index
    %c0_50 = arith.constant 0 : index
    %106 = vector.load %arg11[%c0_49, %c0_50] : memref<2x32xf32, #tpu.memory_space<vmem>>, vector<2x32xf32>
    %cst_51 = arith.constant dense<0.000000e+00> : vector<16x32xf32>
    %107 = tpu.matmul %76, %105, %cst_51 {dimension_numbers = #tpu.dot_dimension_numbers<[1], [0], [0], [1], [0, 0, 1, 1], [], []>} : vector<16x8xf32>, vector<8x32xf32>, vector<16x32xf32> -> vector<16x32xf32>
    %cst_52 = arith.constant dense<0.000000e+00> : vector<32xf32>
    %108 = vector.multi_reduction <add>, %107, %cst_52 [0] : vector<16x32xf32> to vector<32xf32>
    %109 = vector.shape_cast %108 : vector<32xf32> to vector<1x32xf32>
    %cst_53 = arith.constant 1.600000e+01 : f32
    %110 = vector.broadcast %cst_53 : f32 to vector<1x32xf32>
    %111 = arith.divf %109, %110 : vector<1x32xf32>
    %112 = vector.broadcast %111 : vector<1x32xf32> to vector<16x32xf32>
    %113 = arith.subf %107, %112 : vector<16x32xf32>
    %114 = arith.mulf %113, %113 : vector<16x32xf32>
    %cst_54 = arith.constant dense<0.000000e+00> : vector<32xf32>
    %115 = vector.multi_reduction <add>, %114, %cst_54 [0] : vector<16x32xf32> to vector<32xf32>
    %116 = vector.shape_cast %115 : vector<32xf32> to vector<1x32xf32>
    %cst_55 = arith.constant 1.600000e+01 : f32
    %117 = vector.broadcast %cst_55 : f32 to vector<1x32xf32>
    %118 = arith.divf %116, %117 : vector<1x32xf32>
    %119 = vector.broadcast %111 : vector<1x32xf32> to vector<16x32xf32>
    %120 = arith.subf %107, %119 : vector<16x32xf32>
    %cst_56 = arith.constant 9.99999974E-6 : f32
    %121 = vector.broadcast %cst_56 : f32 to vector<1x32xf32>
    %122 = arith.addf %118, %121 : vector<1x32xf32>
    %123 = math.rsqrt %122 : vector<1x32xf32>
    %124 = vector.broadcast %123 : vector<1x32xf32> to vector<16x32xf32>
    %125 = arith.mulf %120, %124 : vector<16x32xf32>
    %126 = vector.extract_strided_slice %106 {offsets = [0, 0], sizes = [1, 32], strides = [1, 1]} : vector<2x32xf32> to vector<1x32xf32>
    %127 = vector.broadcast %126 : vector<1x32xf32> to vector<16x32xf32>
    %128 = arith.mulf %125, %127 : vector<16x32xf32>
    %129 = vector.extract_strided_slice %106 {offsets = [1, 0], sizes = [1, 32], strides = [1, 1]} : vector<2x32xf32> to vector<1x32xf32>
    %130 = vector.broadcast %129 : vector<1x32xf32> to vector<16x32xf32>
    %131 = arith.addf %128, %130 : vector<16x32xf32>
    %c0_57 = arith.constant 0 : index
    %c0_58 = arith.constant 0 : index
    %132 = vector.load %arg15[%c0_57, %c0_58] : memref<16x32xf32, #tpu.memory_space<vmem>>, vector<16x32xf32>
    tpu.vector_store %arg15[%c0_57, %c0_58], %131 {strides = array<i32>} : memref<16x32xf32, #tpu.memory_space<vmem>>, vector<16x32xf32>,
    return
  }
  func.func @transform_0(%arg0: i32) -> (i32, i32) {
    %c0_i32 = arith.constant 0 : i32
    %c0_i32_0 = arith.constant 0 : i32
    %c0_i32_1 = arith.constant 0 : i32
    return %c0_i32, %c0_i32_0 : i32, i32
  }
  func.func @transform_1(%arg0: i32) -> (i32, i32) {
    %c0_i32 = arith.constant 0 : i32
    %c0_i32_0 = arith.constant 0 : i32
    %c0_i32_1 = arith.constant 0 : i32
    return %c0_i32, %c0_i32_0 : i32, i32
  }
  func.func @transform_2(%arg0: i32) -> (i32, i32) {
    %c0_i32 = arith.constant 0 : i32
    %c0_i32_0 = arith.constant 0 : i32
    %c0_i32_1 = arith.constant 0 : i32
    return %c0_i32, %c0_i32_0 : i32, i32
  }
  func.func @transform_3(%arg0: i32) -> (i32, i32) {
    %c0_i32 = arith.constant 0 : i32
    %c0_i32_0 = arith.constant 0 : i32
    %c0_i32_1 = arith.constant 0 : i32
    return %c0_i32, %c0_i32_0 : i32, i32
  }
  func.func @transform_4(%arg0: i32) -> (i32, i32) {
    %c0_i32 = arith.constant 0 : i32
    %c0_i32_0 = arith.constant 0 : i32
    %c0_i32_1 = arith.constant 0 : i32
    return %c0_i32, %c0_i32_0 : i32, i32
  }
  func.func @transform_5(%arg0: i32) -> (i32, i32) {
    %c0_i32 = arith.constant 0 : i32
    %c0_i32_0 = arith.constant 0 : i32
    %c0_i32_1 = arith.constant 0 : i32
    return %c0_i32, %c0_i32_0 : i32, i32
  }
  func.func @transform_6(%arg0: i32) -> (i32, i32) {
    %c0_i32 = arith.constant 0 : i32
    %c0_i32_0 = arith.constant 0 : i32
    %c0_i32_1 = arith.constant 0 : i32
    return %c0_i32, %c0_i32_0 : i32, i32
  }
  func.func @transform_7(%arg0: i32) -> (i32, i32) {
    %c0_i32 = arith.constant 0 : i32
    %c0_i32_0 = arith.constant 0 : i32
    %c0_i32_1 = arith.constant 0 : i32
    return %c0_i32, %c0_i32_0 : i32, i32
  }
  func.func @transform_8(%arg0: i32) -> (i32, i32) {
    %c0_i32 = arith.constant 0 : i32
    %c0_i32_0 = arith.constant 0 : i32
    %c0_i32_1 = arith.constant 0 : i32
    return %c0_i32, %c0_i32_0 : i32, i32
  }
  func.func @transform_9(%arg0: i32) -> (i32, i32) {
    %c0_i32 = arith.constant 0 : i32
    %c0_i32_0 = arith.constant 0 : i32
    %c0_i32_1 = arith.constant 0 : i32
    return %c0_i32, %c0_i32_0 : i32, i32
  }
  func.func @transform_10(%arg0: i32) -> (i32, i32) {
    %c0_i32 = arith.constant 0 : i32
    %c0_i32_0 = arith.constant 0 : i32
    %c0_i32_1 = arith.constant 0 : i32
    return %c0_i32, %c0_i32_0 : i32, i32
  }
  func.func @transform_11(%arg0: i32) -> (i32, i32) {
    %c0_i32 = arith.constant 0 : i32
    %c0_i32_0 = arith.constant 0 : i32
    %c0_i32_1 = arith.constant 0 : i32
    return %c0_i32, %c0_i32_0 : i32, i32
  }
  func.func @transform_12(%arg0: i32) -> (i32, i32) {
    %c0_i32 = arith.constant 0 : i32
    %c0_i32_0 = arith.constant 0 : i32
    %c0_i32_1 = arith.constant 0 : i32
    return %c0_i32, %c0_i32_0 : i32, i32
  }
  func.func @transform_13(%arg0: i32) -> (i32, i32) {
    %c0_i32 = arith.constant 0 : i32
    %c0_i32_0 = arith.constant 0 : i32
    %c0_i32_1 = arith.constant 0 : i32
    return %c0_i32, %c0_i32_0 : i32, i32
  }
  func.func @transform_14(%arg0: i32) -> (i32, i32) {
    %c0_i32 = arith.constant 0 : i32
    %c0_i32_0 = arith.constant 0 : i32
    %c0_i32_1 = arith.constant 0 : i32
    return %c0_i32, %c0_i32_0 : i32, i32
  }
}

</mosaic_0001>

<llo_original>
// kernel: jamie_forward.1
$region0: #{jamie_forward.1}
  #allocation0 [shape = 'u32[]', space=smem, size = 0x4, offset = 0x4, fixed_abs, tag = 'smem constant byte address 0x4 - core index']
  #allocation1 [shape = 'u32[72,128]{1,0:T(1,128)}', space=vmem, size = 0x9000, scoped, tag = 'internal scratch']
  %s0 = inlined_call_operand.vmem [shape: f32[8,16], index: 0, kind: input, shape index: {}]
  %s1 = inlined_call_operand.vmem [shape: f32[16,32], index: 1, kind: input, shape index: {}]
  %s2 = inlined_call_operand.vmem [shape: f32[8,16], index: 2, kind: input, shape index: {}]
  %s3 = inlined_call_operand.vmem [shape: f32[16,8], index: 3, kind: input, shape index: {}]
  %s4 = inlined_call_operand.vmem [shape: f32[2,8], index: 4, kind: input, shape index: {}]
  %s5 = inlined_call_operand.vmem [shape: f32[32,8], index: 5, kind: input, shape index: {}]
  %s6 = inlined_call_operand.vmem [shape: f32[2,8], index: 6, kind: input, shape index: {}]
  %s7 = inlined_call_operand.vmem [shape: f32[8,16], index: 7, kind: input, shape index: {}]
  %s8 = inlined_call_operand.vmem [shape: f32[2,16], index: 8, kind: input, shape index: {}]
  %s9 = inlined_call_operand.vmem [shape: f32[8,32], index: 9, kind: input, shape index: {}]
  %s10 = inlined_call_operand.vmem [shape: f32[2,32], index: 10, kind: input, shape index: {}]
  %s11 = inlined_call_operand.hbm [shape: f32[8,8], index: 11, kind: output, shape index: {0}]
  %s12 = inlined_call_operand.vmem [shape: f32[16,8], index: 12, kind: output, shape index: {1}]
  %s13 = inlined_call_operand.hbm [shape: f32[8,16], index: 13, kind: output, shape index: {2}]
  %s14 = inlined_call_operand.hbm [shape: f32[16,32], index: 14, kind: output, shape index: {3}]
  %15 = xla_tuple %s11, %s12, %s13, %s14
  %s16 = sld [smem:[#allocation0]]
  $region78: #{jamie_forward.1} parent=0
    _
  %s18 = ssub.s32 1, %s16
  %s19 = scalar_select 0, %s18, %s16
  $region1: #{jamie_forward.1} parent=0
    #allocation2 [shape = 'u8[4096]{0}', space=vmem, size = 0x1000, scoped, tag = 'output window, operand 0, single buffered']
    #allocation3 [shape = 's32[1]{0}', space=sflag, size = 0x4, scoped, tag = 'scoped memory for jamie_forward.1']
    #allocation4 [shape = 'u8[4096]{0}', space=vmem, size = 0x1000, scoped, tag = 'output window, operand 2, single buffered']
    #allocation5 [shape = 's32[1]{0}', space=sflag, size = 0x4, scoped, tag = 'scoped memory for jamie_forward.1']
    #allocation6 [shape = 'u8[8192]{0}', space=vmem, size = 0x2000, scoped, tag = 'output window, operand 3, single buffered']
    %20 = vsyncpa [#allocation3], 0
    %21 = vsyncpa [#allocation5], 0
    // Predicated region
    $region2: #{jamie_forward.1} parent=1 // pred_check
      _
    $region3: #{jamie_forward.1} parent=1 // pred_check_branch
      %23 = sbr.rel (0) target = $region5
    $region4: #{jamie_forward.1} parent=1 // pred_region
      _
    $region5: #{jamie_forward.1} parent=1 // pred_fallthru
      _
    // Predicated region
    $region6: #{jamie_forward.1} parent=1 // pred_check
      _
    $region7: #{jamie_forward.1} parent=1 // pred_check_branch
      %25 = sbr.rel (0) target = $region9
    $region8: #{jamie_forward.1} parent=1 // pred_region
      _
    $region9: #{jamie_forward.1} parent=1 // pred_fallthru
      _
    // Predicated region
    $region10: #{jamie_forward.1} parent=1 // pred_check
      _
    $region11: #{jamie_forward.1} parent=1 // pred_check_branch
      %27 = sbr.rel (0) target = $region13
    $region12: #{jamie_forward.1} parent=1 // pred_region
      _
    $region13: #{jamie_forward.1} parent=1 // pred_fallthru
      _
    // Predicated region
    $region14: #{jamie_forward.1} parent=1 // pred_check
      _
    $region15: #{jamie_forward.1} parent=1 // pred_check_branch
      %29 = sbr.rel (0) target = $region17
    $region16: #{jamie_forward.1} parent=1 // pred_region
      _
    $region17: #{jamie_forward.1} parent=1 // pred_fallthru
      _
    // Predicated region
    $region18: #{jamie_forward.1} parent=1 // pred_check
      _
    $region19: #{jamie_forward.1} parent=1 // pred_check_branch
      %31 = sbr.rel (0) target = $region21
    $region20: #{jamie_forward.1} parent=1 // pred_region
      _
    $region21: #{jamie_forward.1} parent=1 // pred_fallthru
      _
    // Predicated region
    $region22: #{jamie_forward.1} parent=1 // pred_check
      _
    $region23: #{jamie_forward.1} parent=1 // pred_check_branch
      %33 = sbr.rel (0) target = $region25
    $region24: #{jamie_forward.1} parent=1 // pred_region
      _
    $region25: #{jamie_forward.1} parent=1 // pred_fallthru
      _
    // Predicated region
    $region26: #{jamie_forward.1} parent=1 // pred_check
      _
    $region27: #{jamie_forward.1} parent=1 // pred_check_branch
      %35 = sbr.rel (0) target = $region29
    $region28: #{jamie_forward.1} parent=1 // pred_region
      _
    $region29: #{jamie_forward.1} parent=1 // pred_fallthru
      _
    // Predicated region
    $region30: #{jamie_forward.1} parent=1 // pred_check
      _
    $region31: #{jamie_forward.1} parent=1 // pred_check_branch
      %37 = sbr.rel (0) target = $region33
    $region32: #{jamie_forward.1} parent=1 // pred_region
      _
    $region33: #{jamie_forward.1} parent=1 // pred_fallthru
      _
    // Predicated region
    $region34: #{jamie_forward.1} parent=1 // pred_check
      _
    $region35: #{jamie_forward.1} parent=1 // pred_check_branch
      %39 = sbr.rel (0) target = $region37
    $region36: #{jamie_forward.1} parent=1 // pred_region
      _
    $region37: #{jamie_forward.1} parent=1 // pred_fallthru
      _
    // Predicated region
    $region38: #{jamie_forward.1} parent=1 // pred_check
      _
    $region39: #{jamie_forward.1} parent=1 // pred_check_branch
      %41 = sbr.rel (0) target = $region41
    $region40: #{jamie_forward.1} parent=1 // pred_region
      _
    $region41: #{jamie_forward.1} parent=1 // pred_fallthru
      _
    // Predicated region
    $region42: #{jamie_forward.1} parent=1 // pred_check
      _
    $region43: #{jamie_forward.1} parent=1 // pred_check_branch
      %43 = sbr.rel (0) target = $region45
    $region44: #{jamie_forward.1} parent=1 // pred_region
      _
    $region45: #{jamie_forward.1} parent=1 // pred_fallthru
      _
    %v44 = vld [vmem:[%s0] sm:$0xff]
    %v45 = vld [vmem:[%s3] sm:$0xff]
    %v46 = vld [vmem:[%s3 + $0x8] sm:$0xff]
    %v47 = vld [vmem:[%s4] sm:$0x3]
    %vm48 = vcmask 130048
    %v50 = vsel %vm48, %v44, 0
    %52 = vmatpush.msra.mxu0 0.0
    %53 = vmatpush.msra.mxu0 0.0
    %54 = vmatpush.msra.mxu0 0.0
    %55 = vmatpush.msra.mxu0 0.0
    %56 = vmatpush.msra.mxu0 0.0
    %57 = vmatpush.msra.mxu0 0.0
    %58 = vmatpush.msra.mxu0 0.0
    %59 = vmatpush.msra.mxu0 0.0
    %60 = vmatpush.msra.mxu0 0.0
    %61 = vmatpush.msra.mxu0 0.0
    %62 = vmatpush.msra.mxu0 0.0
    %63 = vmatpush.msra.mxu0 0.0
    %64 = vmatpush.msra.mxu0 0.0
    %65 = vmatpush.msra.mxu0 0.0
    %66 = vmatpush.msra.mxu0 %v46
    %67 = vmatpush.msra.mxu0 %v45
    %68 = vmatmul.f32.gmra.mxu0 %v50
    %v69 = vpop.f32.mrf.mxu0
    %v70 = vadd.f32 0.0, %v69
    %71 = vdwg.mxu0
    %vm72 = vcmask 64512
    %v73 = vsel %vm72, %v70, 0.0
    %v74 = vrot.slane %v73, 4
    %v75 = vadd.f32 %v73, %v74
    %v76 = vrot.slane %v75, 2
    %v77 = vadd.f32 %v75, %v76
    %v78 = vrot.slane %v77, 1
    %v79 = vadd.f32 %v77, %v78
    %v80 = vrcp.pop 8.0
    %v81 = vmul.f32 8.0, %v80
    %v82 = vsub.f32 1.0, %v81
    %v83 = vmul.f32 %v80, %v82
    %v84 = vadd.f32 %v80, %v83
    %vm85 = vweird.f32 %v80
    %v86 = vsel %vm85, %v80, %v84
    %v87 = vmul.f32 %v79, %v86
    %v88 = vsub.f32 %v70, %v87
    %v89 = vmul.f32 %v88, %v88
    %v90 = vsel %vm72, %v89, 0.0
    %v91 = vrot.slane %v90, 4
    %v92 = vadd.f32 %v90, %v91
    %v93 = vrot.slane %v92, 2
    %v94 = vadd.f32 %v92, %v93
    %v95 = vrot.slane %v94, 1
    %v96 = vadd.f32 %v94, %v95
    %v97 = vmul.f32 %v96, %v86
    %v98 = vadd.f32 %v97, 1e-05
    %v99 = vrsqrt.pop %v98
    %v100 = vmul.f32 %v99, %v98
    %v101 = vmul.f32 %v100, %v99
    %v102 = vmul.f32 0.5, %v101
    %v103 = vsub.f32 1.5, %v102
    %v104 = vmul.f32 %v99, %v103
    %vm105 = vweird.f32 %v98
    %vm106 = vweird.f32 %v99
    %vm107 = vmor %vm105, %vm106
    %v108 = vsel %vm107, %v99, %v104
    %v109 = vmul.f32 %v88, %v108
    %v110 = vperm.slane %v47, 0
    %v111 = vmul.f32 %v109, %v110
    %v112 = vperm.slane %v47, 1
    %v113 = vadd.f32 %v111, %v112
    %v114 = vld [vmem:[%s1] sm:$0xff]
    %v115 = vld [vmem:[%s1 + $0x8] sm:$0xff]
    %v116 = vld [vmem:[%s5] sm:$0xff]
    %v117 = vld [vmem:[%s5 + $0x8] sm:$0xff]
    %v118 = vld [vmem:[%s5 + $0x10] sm:$0xff]
    %v119 = vld [vmem:[%s5 + $0x18] sm:$0xff]
    %v120 = vld [vmem:[%s6] sm:$0x3]
    %vm121 = vcmask 261120
    %v123 = vsel %vm121, %v114, 0
    %v126 = vsel %vm121, %v115, 0
    %128 = vmatpush.msra.mxu0 0.0
    %129 = vmatpush.msra.mxu0 0.0
    %130 = vmatpush.msra.mxu0 0.0
    %131 = vmatpush.msra.mxu0 0.0
    %132 = vmatpush.msra.mxu0 0.0
    %133 = vmatpush.msra.mxu0 0.0
    %134 = vmatpush.msra.mxu0 0.0
    %135 = vmatpush.msra.mxu0 0.0
    %136 = vmatpush.msra.mxu0 0.0
    %137 = vmatpush.msra.mxu0 0.0
    %138 = vmatpush.msra.mxu0 0.0
    %139 = vmatpush.msra.mxu0 0.0
    %140 = vmatpush.msra.mxu0 %v119
    %141 = vmatpush.msra.mxu0 %v118
    %142 = vmatpush.msra.mxu0 %v117
    %143 = vmatpush.msra.mxu0 %v116
    %144 = vmatmul.f32.gmra.mxu0 %v123
    %v145 = vpop.f32.mrf.mxu0
    %v146 = vadd.f32 0.0, %v145
    %147 = vmatmul.f32.gmra.mxu0 %v126
    %v148 = vpop.f32.mrf.mxu0
    %v149 = vadd.f32 0.0, %v148
    %150 = vdwg.mxu0
    %v151 = vsel %vm72, %v146, 0.0
    %v152 = vsel %vm72, %v149, 0.0
    %v153 = vadd.f32 %v151, %v152
    %v154 = vrot.slane %v153, 4
    %v155 = vadd.f32 %v153, %v154
    %v156 = vrot.slane %v155, 2
    %v157 = vadd.f32 %v155, %v156
    %v158 = vrot.slane %v157, 1
    %v159 = vadd.f32 %v157, %v158
    %v160 = vrcp.pop 16.0
    %v161 = vmul.f32 16.0, %v160
    %v162 = vsub.f32 1.0, %v161
    %v163 = vmul.f32 %v160, %v162
    %v164 = vadd.f32 %v160, %v163
    %vm165 = vweird.f32 %v160
    %v166 = vsel %vm165, %v160, %v164
    %v167 = vmul.f32 %v159, %v166
    %v168 = vsub.f32 %v146, %v167
    %v169 = vsub.f32 %v149, %v167
    %v170 = vmul.f32 %v168, %v168
    %v171 = vmul.f32 %v169, %v169
    %v172 = vsel %vm72, %v170, 0.0
    %v173 = vsel %vm72, %v171, 0.0
    %v174 = vadd.f32 %v172, %v173
    %v175 = vrot.slane %v174, 4
    %v176 = vadd.f32 %v174, %v175
    %v177 = vrot.slane %v176, 2
    %v178 = vadd.f32 %v176, %v177
    %v179 = vrot.slane %v178, 1
    %v180 = vadd.f32 %v178, %v179
    %v181 = vmul.f32 %v180, %v166
    %v182 = vadd.f32 %v181, 1e-05
    %v183 = vrsqrt.pop %v182
    %v184 = vmul.f32 %v183, %v182
    %v185 = vmul.f32 %v184, %v183
    %v186 = vmul.f32 0.5, %v185
    %v187 = vsub.f32 1.5, %v186
    %v188 = vmul.f32 %v183, %v187
    %vm189 = vweird.f32 %v182
    %vm190 = vweird.f32 %v183
    %vm191 = vmor %vm189, %vm190
    %v192 = vsel %vm191, %v183, %v188
    %v193 = vmul.f32 %v168, %v192
    %v194 = vmul.f32 %v169, %v192
    %v195 = vperm.slane %v120, 0
    %v196 = vmul.f32 %v193, %v195
    %v197 = vmul.f32 %v194, %v195
    %v198 = vperm.slane %v120, 1
    %v199 = vadd.f32 %v196, %v198
    %v200 = vadd.f32 %v197, %v198
    %201 = vst.msk [vmem:[#allocation2] sm:$0xff] %vm72, %v113
    %202 = vst.msk [vmem:[%s12] sm:$0xff] %vm72, %v199
    %203 = vst.msk [vmem:[%s12 + $0x8] sm:$0xff] %vm72, %v200
    %v204 = vld [vmem:[%s2] sm:$0xff]
    %v206 = vsel %vm48, %v204, 0
    %208 = vmatpush.msra.mxu0 0.0
    %209 = vmatpush.msra.mxu0 0.0
    %210 = vmatpush.msra.mxu0 0.0
    %211 = vmatpush.msra.mxu0 0.0
    %212 = vmatpush.msra.mxu0 0.0
    %213 = vmatpush.msra.mxu0 0.0
    %214 = vmatpush.msra.mxu0 0.0
    %215 = vmatpush.msra.mxu0 0.0
    %216 = vmatpush.msra.mxu0 0.0
    %217 = vmatpush.msra.mxu0 0.0
    %218 = vmatpush.msra.mxu0 0.0
    %219 = vmatpush.msra.mxu0 0.0
    %220 = vmatpush.msra.mxu0 0.0
    %221 = vmatpush.msra.mxu0 0.0
    %222 = vmatpush.msra.mxu0 %v200
    %223 = vmatpush.msra.mxu0 %v199
    %224 = vmatmul.f32.gmra.mxu0 %v206
    %v225 = vpop.f32.mrf.mxu0
    %v226 = vadd.f32 0.0, %v225
    %227 = vdwg.mxu0
    %228 = vxpose.xlu0.b32.start [1/16] %v204, 128
    %229 = vxpose.xlu0.b32.cont [2/16] 0.0, 128
    %230 = vxpose.xlu0.b32.cont [3/16] 0.0, 128
    %231 = vxpose.xlu0.b32.cont [4/16] 0.0, 128
    %232 = vxpose.xlu0.b32.cont [5/16] 0.0, 128
    %233 = vxpose.xlu0.b32.cont [6/16] 0.0, 128
    %234 = vxpose.xlu0.b32.cont [7/16] 0.0, 128
    %235 = vxpose.xlu0.b32.cont [8/16] 0.0, 128
    %236 = vxpose.xlu0.b32.cont [9/16] 0.0, 128
    %237 = vxpose.xlu0.b32.cont [10/16] 0.0, 128
    %238 = vxpose.xlu0.b32.cont [11/16] 0.0, 128
    %239 = vxpose.xlu0.b32.cont [12/16] 0.0, 128
    %240 = vxpose.xlu0.b32.cont [13/16] 0.0, 128
    %241 = vxpose.xlu0.b32.cont [14/16] 0.0, 128
    %242 = vxpose.xlu0.b32.cont [15/16] 0.0, 128
    %243 = vxpose.xlu0.b32.end [16/16] 0.0, 128
    %v244 = vpop.trf.xlu0
    %v245 = vpop.trf.xlu0
    %v246 = vpop.trf.xlu0
    %v247 = vpop.trf.xlu0
    %v248 = vpop.trf.xlu0
    %v249 = vpop.trf.xlu0
    %v250 = vpop.trf.xlu0
    %v251 = vpop.trf.xlu0
    %v252 = vpop.trf.xlu0
    %v253 = vpop.trf.xlu0
    %v254 = vpop.trf.xlu0
    %v255 = vpop.trf.xlu0
    %v256 = vpop.trf.xlu0
    %v257 = vpop.trf.xlu0
    %v258 = vpop.trf.xlu0
    %v259 = vpop.trf.xlu0
    %v261 = vsel %vm72, %v244, 0
    %v264 = vsel %vm72, %v245, 0
    %266 = vmatpush.msra.mxu0 0.0
    %267 = vmatpush.msra.mxu0 0.0
    %268 = vmatpush.msra.mxu0 0.0
    %269 = vmatpush.msra.mxu0 0.0
    %270 = vmatpush.msra.mxu0 0.0
    %271 = vmatpush.msra.mxu0 0.0
    %272 = vmatpush.msra.mxu0 0.0
    %273 = vmatpush.msra.mxu0 0.0
    %274 = vmatpush.msra.mxu0 0.0
    %275 = vmatpush.msra.mxu0 0.0
    %276 = vmatpush.msra.mxu0 0.0
    %277 = vmatpush.msra.mxu0 0.0
    %278 = vmatpush.msra.mxu0 0.0
    %279 = vmatpush.msra.mxu0 0.0
    %280 = vmatpush.msra.mxu0 0.0
    %281 = vmatpush.msra.mxu0 %v113
    %282 = vmatmul.f32.gmra.mxu0 %v261
    %v283 = vpop.f32.mrf.mxu0
    %v284 = vadd.f32 0.0, %v283
    %285 = vmatmul.f32.gmra.mxu0 %v264
    %v286 = vpop.f32.mrf.mxu0
    %v287 = vadd.f32 0.0, %v286
    %288 = vdwg.mxu0
    %v289 = vsel %vm48, %v204, 0.0
    %290 = vadd.xlane.f32.xlu0 %v289
    %v291 = vpop.xlane.xlu0 %290
    %v292 = vadd.f32 %v291, 1.0
    %293 = vmatpush.msra.mxu0 0.0
    %294 = vmatpush.msra.mxu0 0.0
    %295 = vmatpush.msra.mxu0 0.0
    %296 = vmatpush.msra.mxu0 0.0
    %297 = vmatpush.msra.mxu0 0.0
    %298 = vmatpush.msra.mxu0 0.0
    %299 = vmatpush.msra.mxu0 0.0
    %300 = vmatpush.msra.mxu0 0.0
    %301 = vmatpush.msra.mxu0 0.0
    %302 = vmatpush.msra.mxu0 0.0
    %303 = vmatpush.msra.mxu0 0.0
    %304 = vmatpush.msra.mxu0 0.0
    %305 = vmatpush.msra.mxu0 0.0
    %306 = vmatpush.msra.mxu0 0.0
    %307 = vmatpush.msra.mxu0 0.0
    %308 = vmatpush.msra.mxu0 1.0
    %309 = vmatmul.f32.gmra.mxu0 %v261
    %v310 = vpop.f32.mrf.mxu0
    %v311 = vadd.f32 1.0, %v310
    %312 = vmatmul.f32.gmra.mxu0 %v264
    %v313 = vpop.f32.mrf.mxu0
    %v314 = vadd.f32 1.0, %v313
    %315 = vdwg.mxu0
    %v316 = vadd.f32 %v113, %v226
    %v317 = vrcp.pop %v292
    %v318 = vmul.f32 %v292, %v317
    %v319 = vsub.f32 1.0, %v318
    %v320 = vmul.f32 %v317, %v319
    %v321 = vadd.f32 %v317, %v320
    %vm322 = vweird.f32 %v292
    %vm323 = vweird.f32 %v317
    %vm324 = vmor %vm322, %vm323
    %v325 = vsel %vm324, %v317, %v321
    %v326 = vand.u32 2147483647, %v292
    %vm327 = vcmp.eq.f32.partialorder %v326, 8.507059e+37
    %v328 = vand.u32 %v292, 2147483648
    %v329 = vor.u32 1.1754944e-38, %v328
    %v330 = vsel %vm327, %v329, %v325
    %v331 = vmul.f32 %v316, %v330
    %v332 = vadd.f32 %v199, %v284
    %v333 = vadd.f32 %v200, %v287
    %v334 = vrcp.pop %v311
    %v335 = vmul.f32 %v311, %v334
    %v336 = vsub.f32 1.0, %v335
    %v337 = vmul.f32 %v334, %v336
    %v338 = vadd.f32 %v334, %v337
    %vm339 = vweird.f32 %v311
    %vm340 = vweird.f32 %v334
    %vm341 = vmor %vm339, %vm340
    %v342 = vsel %vm341, %v334, %v338
    %v343 = vand.u32 2147483647, %v311
    %vm344 = vcmp.eq.f32.partialorder %v343, 8.507059e+37
    %v345 = vand.u32 %v311, 2147483648
    %v346 = vor.u32 1.1754944e-38, %v345
    %v347 = vsel %vm344, %v346, %v342
    %v348 = vrcp.pop %v314
    %v349 = vmul.f32 %v314, %v348
    %v350 = vsub.f32 1.0, %v349
    %v351 = vmul.f32 %v348, %v350
    %v352 = vadd.f32 %v348, %v351
    %vm353 = vweird.f32 %v314
    %vm354 = vweird.f32 %v348
    %vm355 = vmor %vm353, %vm354
    %v356 = vsel %vm355, %v348, %v352
    %v357 = vand.u32 2147483647, %v314
    %vm358 = vcmp.eq.f32.partialorder %v357, 8.507059e+37
    %v359 = vand.u32 %v314, 2147483648
    %v360 = vor.u32 1.1754944e-38, %v359
    %v361 = vsel %vm358, %v360, %v356
    %363 = vset.pattern.permute.xlu0 0
    %364 = vperm.xlu0 %363, %v347
    %v365 = vpop.permute.xlu0 %364
    %368 = vset.pattern.permute.xlu0 0
    %369 = vperm.xlu0 %368, %v361
    %v370 = vpop.permute.xlu0 %369
    %v372 = vmul.f32 %v332, %v365
    %v373 = vmul.f32 %v333, %v370
    %v374 = vld [vmem:[%s7] sm:$0xff]
    %v375 = vld [vmem:[%s8] sm:$0x3]
    %v377 = vsel %vm72, %v331, 0
    %379 = vmatpush.msra.mxu0 0.0
    %380 = vmatpush.msra.mxu0 0.0
    %381 = vmatpush.msra.mxu0 0.0
    %382 = vmatpush.msra.mxu0 0.0
    %383 = vmatpush.msra.mxu0 0.0
    %384 = vmatpush.msra.mxu0 0.0
    %385 = vmatpush.msra.mxu0 0.0
    %386 = vmatpush.msra.mxu0 0.0
    %387 = vmatpush.msra.mxu0 0.0
    %388 = vmatpush.msra.mxu0 0.0
    %389 = vmatpush.msra.mxu0 0.0
    %390 = vmatpush.msra.mxu0 0.0
    %391 = vmatpush.msra.mxu0 0.0
    %392 = vmatpush.msra.mxu0 0.0
    %393 = vmatpush.msra.mxu0 0.0
    %394 = vmatpush.msra.mxu0 %v374
    %395 = vmatmul.f32.gmra.mxu0 %v377
    %v396 = vpop.f32.mrf.mxu0
    %v397 = vadd.f32 0.0, %v396
    %398 = vdwg.mxu0
    %v399 = vsel %vm48, %v397, 0.0
    %v400 = vrot.slane %v399, 4
    %v401 = vadd.f32 %v399, %v400
    %v402 = vrot.slane %v401, 2
    %v403 = vadd.f32 %v401, %v402
    %v404 = vrot.slane %v403, 1
    %v405 = vadd.f32 %v403, %v404
    %v406 = vmul.f32 %v405, %v86
    %v407 = vsub.f32 %v397, %v406
    %v408 = vmul.f32 %v407, %v407
    %v409 = vsel %vm48, %v408, 0.0
    %v410 = vrot.slane %v409, 4
    %v411 = vadd.f32 %v409, %v410
    %v412 = vrot.slane %v411, 2
    %v413 = vadd.f32 %v411, %v412
    %v414 = vrot.slane %v413, 1
    %v415 = vadd.f32 %v413, %v414
    %v416 = vmul.f32 %v415, %v86
    %v417 = vadd.f32 %v416, 1e-05
    %v418 = vrsqrt.pop %v417
    %v419 = vmul.f32 %v418, %v417
    %v420 = vmul.f32 %v419, %v418
    %v421 = vmul.f32 0.5, %v420
    %v422 = vsub.f32 1.5, %v421
    %v423 = vmul.f32 %v418, %v422
    %vm424 = vweird.f32 %v417
    %vm425 = vweird.f32 %v418
    %vm426 = vmor %vm424, %vm425
    %v427 = vsel %vm426, %v418, %v423
    %v428 = vmul.f32 %v407, %v427
    %v429 = vperm.slane %v375, 0
    %v430 = vmul.f32 %v428, %v429
    %v431 = vperm.slane %v375, 1
    %v432 = vadd.f32 %v430, %v431
    %433 = vst.msk [vmem:[#allocation4] sm:$0xff] %vm48, %v432
    %v434 = vld [vmem:[%s9] sm:$0xff]
    %v435 = vld [vmem:[%s10] sm:$0x3]
    %v437 = vsel %vm72, %v372, 0
    %v440 = vsel %vm72, %v373, 0
    %442 = vmatpush.msra.mxu0 0.0
    %443 = vmatpush.msra.mxu0 0.0
    %444 = vmatpush.msra.mxu0 0.0
    %445 = vmatpush.msra.mxu0 0.0
    %446 = vmatpush.msra.mxu0 0.0
    %447 = vmatpush.msra.mxu0 0.0
    %448 = vmatpush.msra.mxu0 0.0
    %449 = vmatpush.msra.mxu0 0.0
    %450 = vmatpush.msra.mxu0 0.0
    %451 = vmatpush.msra.mxu0 0.0
    %452 = vmatpush.msra.mxu0 0.0
    %453 = vmatpush.msra.mxu0 0.0
    %454 = vmatpush.msra.mxu0 0.0
    %455 = vmatpush.msra.mxu0 0.0
    %456 = vmatpush.msra.mxu0 0.0
    %457 = vmatpush.msra.mxu0 %v434
    %458 = vmatmul.f32.gmra.mxu0 %v437
    %v459 = vpop.f32.mrf.mxu0
    %v460 = vadd.f32 0.0, %v459
    %461 = vmatmul.f32.gmra.mxu0 %v440
    %v462 = vpop.f32.mrf.mxu0
    %v463 = vadd.f32 0.0, %v462
    %464 = vdwg.mxu0
    %v465 = vsel %vm121, %v460, 0.0
    %v466 = vsel %vm121, %v463, 0.0
    %v467 = vadd.f32 %v465, %v466
    %v468 = vrot.slane %v467, 4
    %v469 = vadd.f32 %v467, %v468
    %v470 = vrot.slane %v469, 2
    %v471 = vadd.f32 %v469, %v470
    %v472 = vrot.slane %v471, 1
    %v473 = vadd.f32 %v471, %v472
    %v474 = vmul.f32 %v473, %v166
    %v475 = vsub.f32 %v460, %v474
    %v476 = vsub.f32 %v463, %v474
    %v477 = vmul.f32 %v475, %v475
    %v478 = vmul.f32 %v476, %v476
    %v479 = vsel %vm121, %v477, 0.0
    %v480 = vsel %vm121, %v478, 0.0
    %v481 = vadd.f32 %v479, %v480
    %v482 = vrot.slane %v481, 4
    %v483 = vadd.f32 %v481, %v482
    %v484 = vrot.slane %v483, 2
    %v485 = vadd.f32 %v483, %v484
    %v486 = vrot.slane %v485, 1
    %v487 = vadd.f32 %v485, %v486
    %v488 = vmul.f32 %v487, %v166
    %v489 = vadd.f32 %v488, 1e-05
    %v490 = vrsqrt.pop %v489
    %v491 = vmul.f32 %v490, %v489
    %v492 = vmul.f32 %v491, %v490
    %v493 = vmul.f32 0.5, %v492
    %v494 = vsub.f32 1.5, %v493
    %v495 = vmul.f32 %v490, %v494
    %vm496 = vweird.f32 %v489
    %vm497 = vweird.f32 %v490
    %vm498 = vmor %vm496, %vm497
    %v499 = vsel %vm498, %v490, %v495
    %v500 = vmul.f32 %v475, %v499
    %v501 = vmul.f32 %v476, %v499
    %v502 = vperm.slane %v435, 0
    %v503 = vmul.f32 %v500, %v502
    %v504 = vmul.f32 %v501, %v502
    %v505 = vperm.slane %v435, 1
    %v506 = vadd.f32 %v503, %v505
    %v507 = vadd.f32 %v504, %v505
    %508 = vst.msk [vmem:[#allocation6] sm:$0xff] %vm121, %v506
    %509 = vst.msk [vmem:[#allocation6 + $0x8] sm:$0xff] %vm121, %v507
    // Predicated region
    $region46: #{jamie_forward.1} parent=1 // pred_check
      _
    $region47: #{jamie_forward.1} parent=1 // pred_check_branch
      %511 = sbr.rel (0) target = $region49
    $region48: #{jamie_forward.1} parent=1 // pred_region
      %513 = vsyncadd [#allocation3], 0
      %s515 = sshll.u32 [#allocation2], 4
      %s516 = int_to_ptr.vmem [resolvable:$true] %s515
      %s517 = sshll.u32 %s11, 4
      %s518 = int_to_ptr.hbm [resolvable:$true] %s517
      %520 = dma.vmem_to_hbm [thread:$0]  %s516, 128, %s518, [#allocation3]
    $region49: #{jamie_forward.1} parent=1 // pred_fallthru
      _
    // Predicated region
    $region50: #{jamie_forward.1} parent=1 // pred_check
      _
    $region51: #{jamie_forward.1} parent=1 // pred_check_branch
      %522 = sbr.rel (0) target = $region53
    $region52: #{jamie_forward.1} parent=1 // pred_region
      _
    $region53: #{jamie_forward.1} parent=1 // pred_fallthru
      _
    // Predicated region
    $region54: #{jamie_forward.1} parent=1 // pred_check
      _
    $region55: #{jamie_forward.1} parent=1 // pred_check_branch
      %524 = sbr.rel (0) target = $region57
    $region56: #{jamie_forward.1} parent=1 // pred_region
      %526 = vsyncadd [#allocation5], 0
      %s528 = sshll.u32 [#allocation4], 4
      %s529 = int_to_ptr.vmem [resolvable:$true] %s528
      %s530 = sshll.u32 %s13, 4
      %s531 = int_to_ptr.hbm [resolvable:$true] %s530
      %533 = dma.vmem_to_hbm [thread:$0]  %s529, 128, %s531, [#allocation5]
    $region57: #{jamie_forward.1} parent=1 // pred_fallthru
      _
    // Predicated region
    $region58: #{jamie_forward.1} parent=1 // pred_check
      _
    $region59: #{jamie_forward.1} parent=1 // pred_check_branch
      %535 = sbr.rel (0) target = $region61
    $region60: #{jamie_forward.1} parent=1 // pred_region
      %537 = vsyncadd [#allocation5], 0
      %s538 = sshll.u32 [#allocation6], 4
      %s539 = int_to_ptr.vmem [resolvable:$true] %s538
      %s540 = sshll.u32 %s14, 4
      %s541 = int_to_ptr.hbm [resolvable:$true] %s540
      %546 = dma.vmem_to_hbm [thread:$0]  %s539, 256, %s541, [#allocation5], 128, 128, 8
    $region61: #{jamie_forward.1} parent=1 // pred_fallthru
      _
    // Predicated region
    $region62: #{jamie_forward.1} parent=1 // pred_check
      _
    $region63: #{jamie_forward.1} parent=1 // pred_check_branch
      %548 = sbr.rel (0) target = $region65
    $region64: #{jamie_forward.1} parent=1 // pred_region
      %550 = dma.done [#allocation3], 128
    $region65: #{jamie_forward.1} parent=1 // pred_fallthru
      _
    // Predicated region
    $region66: #{jamie_forward.1} parent=1 // pred_check
      _
    $region67: #{jamie_forward.1} parent=1 // pred_check_branch
      %552 = sbr.rel (0) target = $region69
    $region68: #{jamie_forward.1} parent=1 // pred_region
      _
    $region69: #{jamie_forward.1} parent=1 // pred_fallthru
      _
    // Predicated region
    $region70: #{jamie_forward.1} parent=1 // pred_check
      _
    $region71: #{jamie_forward.1} parent=1 // pred_check_branch
      %554 = sbr.rel (0) target = $region73
    $region72: #{jamie_forward.1} parent=1 // pred_region
      %556 = dma.done [#allocation5], 128
    $region73: #{jamie_forward.1} parent=1 // pred_fallthru
      _
    // Predicated region
    $region74: #{jamie_forward.1} parent=1 // pred_check
      _
    $region75: #{jamie_forward.1} parent=1 // pred_check_branch
      %558 = sbr.rel (0) target = $region77
    $region76: #{jamie_forward.1} parent=1 // pred_region
      %560 = dma.done [#allocation5], 256
    $region77: #{jamie_forward.1} parent=1 // pred_fallthru
      _
    %561 = vsyncpa [#allocation3], 1
    %562 = vsyncpa [#allocation5], 1

</llo_original>
